<compile_context>
chip_gen: v7x
topology: tpu7x:2x2x1
jax: 0.10.0
libtpu: 0.0.40
codegen_flags: <defaults>
</compile_context>

<pallas_src>
import functools

import jax
import jax.numpy as jnp
from jax.experimental import pallas as pl
from jax.experimental.pallas import tpu as pltpu

_LANE = 128
_SUBLANE = 8


def _round_up(n: int, m: int) -> int:
    return ((n + m - 1) // m) * m


def _fused_mlp_kernel(*refs, n_layers: int):
    """refs = (x_ref, w_0..w_{L-1}, b_0..b_{L-1}, o_ref). All tiles live in VMEM."""
    x_ref = refs[0]
    w_refs = refs[1:1 + n_layers]
    b_refs = refs[1 + n_layers:1 + 2 * n_layers]
    o_ref = refs[-1]

    h = x_ref[...]
    for i in range(n_layers):
        # MXU matmul with f32 accumulation + broadcasted bias add.
        h = jnp.dot(h, w_refs[i][...], preferred_element_type=jnp.float32)
        h = h + b_refs[i][...]            # (1, OUTp) broadcasts over batch rows
        if i != n_layers - 1:
            h = jnp.tanh(h)               # no activation after the output layer
    o_ref[...] = h.astype(o_ref.dtype)


def init_dnn_params(key, input_size, hidden_size, output_size, depth):
    """Deterministic PyTorch-style Linear init: U(-1/sqrt(fan_in), 1/sqrt(fan_in)).

    Weights stored as (in_features, out_features) so y = x @ W + b.
    """
    dims = [input_size] + [hidden_size] * (depth + 1) + [output_size]
    params = []
    for fan_in, fan_out in zip(dims[:-1], dims[1:]):
        key, kw, kb = jax.random.split(key, 3)
        bound = 1.0 / (fan_in ** 0.5)
        w = jax.random.uniform(kw, (fan_in, fan_out), jnp.float32, -bound, bound)
        b = jax.random.uniform(kb, (fan_out,), jnp.float32, -bound, bound)
        params.append((w, b))
    return params


def prepare_padded_params(params):
    """Pad layer params ONCE, host-side, for the fused kernel.

    * out_features padded to a lane multiple (128) on every layer: final HBM
      store is lane-dense and interior activations use full vreg lanes.
    * in_features (contraction dim) of layer 0 is left at its natural size --
      it only has to match x's feature width -- which removes the biggest chunk
      of redundant weight DMA.  Interior / output layers consume the 128-lane
      activation, so their in_features is padded to the previous layer's padded
      out_features (the extra rows are zero and contribute nothing).
    Padded weight cols / bias lanes are zero and tanh(0) == 0, so padded lanes
    of every activation stay exactly zero through the whole chain.
    """
    padded = []
    prev_out_p = None
    for li, (w, b) in enumerate(params):
        fi, fo = w.shape
        fip = fi if li == 0 else prev_out_p
        fop = _round_up(fo, _LANE)
        w_p = jnp.zeros((fip, fop), jnp.float32).at[:fi, :fo].set(w)
        b_p = jnp.zeros((1, fop), jnp.float32).at[0, :fo].set(b)
        padded.append((w_p, b_p))
        prev_out_p = fop
    return padded


@functools.partial(jax.jit, static_argnames=("output_size",))
def dnn_forward_fused(x, padded_params, output_size: int):
    """Run the whole MLP in one fused Pallas kernel; returns (batch, output_size)."""
    B, IN = x.shape
    n_layers = len(padded_params)
    assert padded_params[0][0].shape[0] == IN, "layer-0 in_features must match x"
    out_pad = padded_params[-1][0].shape[1]

    # Batch tiling: bigger M per MXU pass is better (up to the 256-row MXU of
    # v6e/v7x). At the demo size (B=8) this is one unpadded tile, so the wrapper
    # does no padding work at all; larger batches walk a grid over batch tiles
    # with the weights staying VMEM-resident across steps.
    tile_b = _round_up(B, _SUBLANE) if B <= 256 else 256
    Bp = _round_up(B, tile_b)
    if Bp != B:
        x = jnp.pad(x, ((0, Bp - B), (0, 0)))
    num_tiles = Bp // tile_b

    ws = [w for (w, _) in padded_params]
    bs = [b for (_, b) in padded_params]

    in_specs = (
        [pl.BlockSpec((tile_b, IN), lambda i: (i, 0))]            # x walks batch
        + [pl.BlockSpec(w.shape, lambda i: (0, 0)) for w in ws]   # weights resident
        + [pl.BlockSpec(b.shape, lambda i: (0, 0)) for b in bs]   # biases resident
    )

    kernel = functools.partial(_fused_mlp_kernel, n_layers=n_layers)
    out_p = pl.pallas_call(
        kernel,
        grid=(num_tiles,),
        out_shape=jax.ShapeDtypeStruct((Bp, out_pad), jnp.float32),
        in_specs=in_specs,
        out_specs=pl.BlockSpec((tile_b, out_pad), lambda i: (i, 0)),
        # Only shard across v7x's two TensorCores when there is >1 tile of work.
        compiler_params=pltpu.CompilerParams(
            dimension_semantics=(("parallel",) if num_tiles > 1 else ("arbitrary",))),
        # Tiny resident footprint (<1 MiB) fits default scoped VMEM on v5e/v6e/v7x.
        # When scaling hidden_size: stream weights per layer and set
        # vmem_limit_bytes sized against v7x's 64 MiB (32 MiB default scoped).
    )(x, *ws, *bs)

    return out_p[:B, :output_size]


if __name__ == "__main__":
    # Small, deterministic problem: batch=8, input=16, hidden=32, output=4, depth=2.
    input_size, hidden_size, output_size, depth = 16, 32, 4, 2
    batch = 8

    key = jax.random.PRNGKey(0)
    key, kx = jax.random.split(key)
    x = jax.random.normal(kx, (batch, input_size), jnp.float32)

    params = init_dnn_params(key, input_size, hidden_size, output_size, depth)
    padded_params = prepare_padded_params(params)

    out = dnn_forward_fused(x, padded_params, output_size)
    jax.block_until_ready(out)

    # Sanity check against plain-JAX reference of the same MLP.
    ref = x
    for i, (w, b) in enumerate(params):
        ref = ref @ w + b
        if i != len(params) - 1:
            ref = jnp.tanh(ref)
    assert out.shape == (batch, output_size)
    assert jnp.allclose(out, ref, atol=1e-5, rtol=1e-5), (
        f"max abs err {jnp.max(jnp.abs(out - ref))}"
    )

    print("KERNEL_OK")
</pallas_src>

<mosaic_0001>
module attributes {stable_mosaic.version = 11 : i64} {
  func.func @_fused_mlp_kernel(%arg0: i32, %arg1: memref<8x16xf32, #tpu.memory_space<vmem>>, %arg2: memref<16x128xf32, #tpu.memory_space<vmem>>, %arg3: memref<128x128xf32, #tpu.memory_space<vmem>>, %arg4: memref<128x128xf32, #tpu.memory_space<vmem>>, %arg5: memref<128x128xf32, #tpu.memory_space<vmem>>, %arg6: memref<1x128xf32, #tpu.memory_space<vmem>>, %arg7: memref<1x128xf32, #tpu.memory_space<vmem>>, %arg8: memref<1x128xf32, #tpu.memory_space<vmem>>, %arg9: memref<1x128xf32, #tpu.memory_space<vmem>>, %arg10: memref<8x128xf32, #tpu.memory_space<vmem>>) attributes {dimension_semantics = [#tpu.dimension_semantics<arbitrary>], iteration_bounds = array<i64: 1>, scalar_prefetch = 0 : i64, scratch_operands = 0 : i64, tpu.core_type = #tpu.core_type<tc>, window_params = [{transform_indices = @transform_0, window_bounds = array<i64: 8, 16>}, {pipeline_mode = #tpu.pipeline_mode<synchronous>, transform_indices = @transform_1, window_bounds = array<i64: 16, 128>}, {pipeline_mode = #tpu.pipeline_mode<synchronous>, transform_indices = @transform_2, window_bounds = array<i64: 128, 128>}, {pipeline_mode = #tpu.pipeline_mode<synchronous>, transform_indices = @transform_3, window_bounds = array<i64: 128, 128>}, {pipeline_mode = #tpu.pipeline_mode<synchronous>, transform_indices = @transform_4, window_bounds = array<i64: 128, 128>}, {pipeline_mode = #tpu.pipeline_mode<synchronous>, transform_indices = @transform_5, window_bounds = array<i64: 1, 128>}, {pipeline_mode = #tpu.pipeline_mode<synchronous>, transform_indices = @transform_6, window_bounds = array<i64: 1, 128>}, {pipeline_mode = #tpu.pipeline_mode<synchronous>, transform_indices = @transform_7, window_bounds = array<i64: 1, 128>}, {pipeline_mode = #tpu.pipeline_mode<synchronous>, transform_indices = @transform_8, window_bounds = array<i64: 1, 128>}, {transform_indices = @transform_9, window_bounds = array<i64: 8, 128>}]} {
    %c0 = arith.constant 0 : index
    %c0_0 = arith.constant 0 : index
    %0 = vector.load %arg1[%c0, %c0_0] : memref<8x16xf32, #tpu.memory_space<vmem>>, vector<8x16xf32>
    %c0_1 = arith.constant 0 : index
    %c0_2 = arith.constant 0 : index
    %1 = vector.load %arg2[%c0_1, %c0_2] : memref<16x128xf32, #tpu.memory_space<vmem>>, vector<16x128xf32>
    %cst = arith.constant dense<0.000000e+00> : vector<8x128xf32>
    %2 = tpu.matmul %0, %1, %cst {dimension_numbers = #tpu.dot_dimension_numbers<[1], [0], [0], [1], [0, 0, 1, 1], [], []>} : vector<8x16xf32>, vector<16x128xf32>, vector<8x128xf32> -> vector<8x128xf32>
    %c0_3 = arith.constant 0 : index
    %c0_4 = arith.constant 0 : index
    %3 = vector.load %arg6[%c0_3, %c0_4] : memref<1x128xf32, #tpu.memory_space<vmem>>, vector<1x128xf32>
    %4 = vector.broadcast %3 : vector<1x128xf32> to vector<8x128xf32>
    %5 = arith.addf %2, %4 : vector<8x128xf32>
    %6 = math.tanh %5 : vector<8x128xf32>
    %c0_5 = arith.constant 0 : index
    %c0_6 = arith.constant 0 : index
    %7 = vector.load %arg3[%c0_5, %c0_6] : memref<128x128xf32, #tpu.memory_space<vmem>>, vector<128x128xf32>
    %cst_7 = arith.constant dense<0.000000e+00> : vector<8x128xf32>
    %8 = tpu.matmul %6, %7, %cst_7 {dimension_numbers = #tpu.dot_dimension_numbers<[1], [0], [0], [1], [0, 0, 1, 1], [], []>} : vector<8x128xf32>, vector<128x128xf32>, vector<8x128xf32> -> vector<8x128xf32>
    %c0_8 = arith.constant 0 : index
    %c0_9 = arith.constant 0 : index
    %9 = vector.load %arg7[%c0_8, %c0_9] : memref<1x128xf32, #tpu.memory_space<vmem>>, vector<1x128xf32>
    %10 = vector.broadcast %9 : vector<1x128xf32> to vector<8x128xf32>
    %11 = arith.addf %8, %10 : vector<8x128xf32>
    %12 = math.tanh %11 : vector<8x128xf32>
    %c0_10 = arith.constant 0 : index
    %c0_11 = arith.constant 0 : index
    %13 = vector.load %arg4[%c0_10, %c0_11] : memref<128x128xf32, #tpu.memory_space<vmem>>, vector<128x128xf32>
    %cst_12 = arith.constant dense<0.000000e+00> : vector<8x128xf32>
    %14 = tpu.matmul %12, %13, %cst_12 {dimension_numbers = #tpu.dot_dimension_numbers<[1], [0], [0], [1], [0, 0, 1, 1], [], []>} : vector<8x128xf32>, vector<128x128xf32>, vector<8x128xf32> -> vector<8x128xf32>
    %c0_13 = arith.constant 0 : index
    %c0_14 = arith.constant 0 : index
    %15 = vector.load %arg8[%c0_13, %c0_14] : memref<1x128xf32, #tpu.memory_space<vmem>>, vector<1x128xf32>
    %16 = vector.broadcast %15 : vector<1x128xf32> to vector<8x128xf32>
    %17 = arith.addf %14, %16 : vector<8x128xf32>
    %18 = math.tanh %17 : vector<8x128xf32>
    %c0_15 = arith.constant 0 : index
    %c0_16 = arith.constant 0 : index
    %19 = vector.load %arg5[%c0_15, %c0_16] : memref<128x128xf32, #tpu.memory_space<vmem>>, vector<128x128xf32>
    %cst_17 = arith.constant dense<0.000000e+00> : vector<8x128xf32>
    %20 = tpu.matmul %18, %19, %cst_17 {dimension_numbers = #tpu.dot_dimension_numbers<[1], [0], [0], [1], [0, 0, 1, 1], [], []>} : vector<8x128xf32>, vector<128x128xf32>, vector<8x128xf32> -> vector<8x128xf32>
    %c0_18 = arith.constant 0 : index
    %c0_19 = arith.constant 0 : index
    %21 = vector.load %arg9[%c0_18, %c0_19] : memref<1x128xf32, #tpu.memory_space<vmem>>, vector<1x128xf32>
    %22 = vector.broadcast %21 : vector<1x128xf32> to vector<8x128xf32>
    %23 = arith.addf %20, %22 : vector<8x128xf32>
    %c0_20 = arith.constant 0 : index
    %c0_21 = arith.constant 0 : index
    %24 = vector.load %arg10[%c0_20, %c0_21] : memref<8x128xf32, #tpu.memory_space<vmem>>, vector<8x128xf32>
    tpu.vector_store %arg10[%c0_20, %c0_21], %23 {strides = array<i32>} : memref<8x128xf32, #tpu.memory_space<vmem>>, vector<8x128xf32>,
    return
  }
  func.func @transform_0(%arg0: i32) -> (i32, i32) {
    %c0_i32 = arith.constant 0 : i32
    %c0_i32_0 = arith.constant 0 : i32
    return %arg0, %c0_i32 : i32, i32
  }
  func.func @transform_1(%arg0: i32) -> (i32, i32) {
    %c0_i32 = arith.constant 0 : i32
    %c0_i32_0 = arith.constant 0 : i32
    %c0_i32_1 = arith.constant 0 : i32
    return %c0_i32, %c0_i32_0 : i32, i32
  }
  func.func @transform_2(%arg0: i32) -> (i32, i32) {
    %c0_i32 = arith.constant 0 : i32
    %c0_i32_0 = arith.constant 0 : i32
    %c0_i32_1 = arith.constant 0 : i32
    return %c0_i32, %c0_i32_0 : i32, i32
  }
  func.func @transform_3(%arg0: i32) -> (i32, i32) {
    %c0_i32 = arith.constant 0 : i32
    %c0_i32_0 = arith.constant 0 : i32
    %c0_i32_1 = arith.constant 0 : i32
    return %c0_i32, %c0_i32_0 : i32, i32
  }
  func.func @transform_4(%arg0: i32) -> (i32, i32) {
    %c0_i32 = arith.constant 0 : i32
    %c0_i32_0 = arith.constant 0 : i32
    %c0_i32_1 = arith.constant 0 : i32
    return %c0_i32, %c0_i32_0 : i32, i32
  }
  func.func @transform_5(%arg0: i32) -> (i32, i32) {
    %c0_i32 = arith.constant 0 : i32
    %c0_i32_0 = arith.constant 0 : i32
    %c0_i32_1 = arith.constant 0 : i32
    return %c0_i32, %c0_i32_0 : i32, i32
  }
  func.func @transform_6(%arg0: i32) -> (i32, i32) {
    %c0_i32 = arith.constant 0 : i32
    %c0_i32_0 = arith.constant 0 : i32
    %c0_i32_1 = arith.constant 0 : i32
    return %c0_i32, %c0_i32_0 : i32, i32
  }
  func.func @transform_7(%arg0: i32) -> (i32, i32) {
    %c0_i32 = arith.constant 0 : i32
    %c0_i32_0 = arith.constant 0 : i32
    %c0_i32_1 = arith.constant 0 : i32
    return %c0_i32, %c0_i32_0 : i32, i32
  }
  func.func @transform_8(%arg0: i32) -> (i32, i32) {
    %c0_i32 = arith.constant 0 : i32
    %c0_i32_0 = arith.constant 0 : i32
    %c0_i32_1 = arith.constant 0 : i32
    return %c0_i32, %c0_i32_0 : i32, i32
  }
  func.func @transform_9(%arg0: i32) -> (i32, i32) {
    %c0_i32 = arith.constant 0 : i32
    %c0_i32_0 = arith.constant 0 : i32
    return %arg0, %c0_i32 : i32, i32
  }
}

</mosaic_0001>

<llo_original>
// kernel: dnn_forward_fused.1
$region0: #{dnn_forward_fused.1}
  #allocation0 [shape = 'u32[]', space=smem, size = 0x4, offset = 0x4, fixed_abs, tag = 'smem constant byte address 0x4 - core index']
  #allocation1 [shape = 'u32[144,128]{1,0:T(1,128)}', space=vmem, size = 0x12000, scoped, tag = 'internal scratch']
  %s0 = inlined_call_operand.hbm [shape: f32[8,16], index: 0, kind: input, shape index: {}]
  %s1 = inlined_call_operand.hbm [shape: f32[16,128], index: 1, kind: input, shape index: {}]
  %s2 = inlined_call_operand.hbm [shape: f32[128,128], index: 2, kind: input, shape index: {}]
  %s3 = inlined_call_operand.hbm [shape: f32[128,128], index: 3, kind: input, shape index: {}]
  %s4 = inlined_call_operand.hbm [shape: f32[128,128], index: 4, kind: input, shape index: {}]
  %s5 = inlined_call_operand.vmem [shape: f32[1,128], index: 5, kind: input, shape index: {}]
  %s6 = inlined_call_operand.vmem [shape: f32[1,128], index: 6, kind: input, shape index: {}]
  %s7 = inlined_call_operand.vmem [shape: f32[1,128], index: 7, kind: input, shape index: {}]
  %s8 = inlined_call_operand.vmem [shape: f32[1,128], index: 8, kind: input, shape index: {}]
  %s9 = inlined_call_operand.vmem [shape: f32[8,128], index: 9, kind: output, shape index: {}]
  %s10 = sld [smem:[#allocation0]]
  $region66: #{dnn_forward_fused.1} parent=0
    _
  %s12 = ssub.s32 1, %s10
  %s13 = scalar_select 0, %s12, %s10
  $region1: #{dnn_forward_fused.1} parent=0
    #allocation2 [shape = 'u8[4096]{0}', space=vmem, size = 0x1000, scoped, tag = 'input window, operand 0, single buffered']
    #allocation3 [shape = 's32[1]{0}', space=sflag, size = 0x4, scoped, tag = 'scoped memory for dnn_forward_fused.1']
    #allocation4 [shape = 'u8[8192]{0}', space=vmem, size = 0x2000, scoped, tag = 'input window, operand 1, single buffered']
    #allocation5 [shape = 's32[1]{0}', space=sflag, size = 0x4, scoped, tag = 'scoped memory for dnn_forward_fused.1']
    #allocation6 [shape = 'u8[65536]{0}', space=vmem, size = 0x10000, scoped, tag = 'input window, operand 2, single buffered']
    #allocation7 [shape = 'u8[65536]{0}', space=vmem, size = 0x10000, scoped, tag = 'input window, operand 3, single buffered']
    #allocation8 [shape = 's32[1]{0}', space=sflag, size = 0x4, scoped, tag = 'scoped memory for dnn_forward_fused.1']
    #allocation9 [shape = 'u8[65536]{0}', space=vmem, size = 0x10000, scoped, tag = 'input window, operand 4, single buffered']
    %14 = vsyncpa [#allocation3], 0
    %15 = vsyncpa [#allocation5], 0
    %16 = vsyncpa [#allocation8], 0
    // Predicated region
    $region2: #{dnn_forward_fused.1} parent=1 // pred_check
      _
    $region3: #{dnn_forward_fused.1} parent=1 // pred_check_branch
      %18 = sbr.rel (0) target = $region5
    $region4: #{dnn_forward_fused.1} parent=1 // pred_region
      %s20 = ssub.s32 128, 128
      %21 = vsyncadd [#allocation3], %s20
      %s23 = sshll.u32 [#allocation2], 4
      %s24 = int_to_ptr.vmem [resolvable:$true] %s23
      %26 = dma.hbm_to_vmem [thread:$0]  %s0, 128, %s24, [#allocation3]
    $region5: #{dnn_forward_fused.1} parent=1 // pred_fallthru
      _
    // Predicated region
    $region6: #{dnn_forward_fused.1} parent=1 // pred_check
      _
    $region7: #{dnn_forward_fused.1} parent=1 // pred_check_branch
      %28 = sbr.rel (0) target = $region9
    $region8: #{dnn_forward_fused.1} parent=1 // pred_region
      %s30 = ssub.s32 256, 256
      %31 = vsyncadd [#allocation5], %s30
      %s32 = sshll.u32 [#allocation4], 4
      %s33 = int_to_ptr.vmem [resolvable:$true] %s32
      %38 = dma.hbm_to_vmem [thread:$0]  %s1, 256, %s33, [#allocation5], 128, 128, 8
    $region9: #{dnn_forward_fused.1} parent=1 // pred_fallthru
      _
    // Predicated region
    $region10: #{dnn_forward_fused.1} parent=1 // pred_check
      _
    $region11: #{dnn_forward_fused.1} parent=1 // pred_check_branch
      %40 = sbr.rel (0) target = $region13
    $region12: #{dnn_forward_fused.1} parent=1 // pred_region
      %s42 = ssub.s32 2048, 2048
      %43 = vsyncadd [#allocation5], %s42
      %s44 = sshll.u32 [#allocation6], 4
      %s45 = int_to_ptr.vmem [resolvable:$true] %s44
      %50 = dma.hbm_to_vmem [thread:$0]  %s2, 2048, %s45, [#allocation5], 128, 128, 8
    $region13: #{dnn_forward_fused.1} parent=1 // pred_fallthru
      _
    // Predicated region
    $region14: #{dnn_forward_fused.1} parent=1 // pred_check
      _
    $region15: #{dnn_forward_fused.1} parent=1 // pred_check_branch
      %52 = sbr.rel (0) target = $region17
    $region16: #{dnn_forward_fused.1} parent=1 // pred_region
      %s54 = ssub.s32 2048, 2048
      %55 = vsyncadd [#allocation8], %s54
      %s56 = sshll.u32 [#allocation7], 4
      %s57 = int_to_ptr.vmem [resolvable:$true] %s56
      %62 = dma.hbm_to_vmem [thread:$0]  %s3, 2048, %s57, [#allocation8], 128, 128, 8
    $region17: #{dnn_forward_fused.1} parent=1 // pred_fallthru
      _
    // Predicated region
    $region18: #{dnn_forward_fused.1} parent=1 // pred_check
      _
    $region19: #{dnn_forward_fused.1} parent=1 // pred_check_branch
      %64 = sbr.rel (0) target = $region21
    $region20: #{dnn_forward_fused.1} parent=1 // pred_region
      %s66 = ssub.s32 2048, 2048
      %67 = vsyncadd [#allocation8], %s66
      %s68 = sshll.u32 [#allocation9], 4
      %s69 = int_to_ptr.vmem [resolvable:$true] %s68
      %74 = dma.hbm_to_vmem [thread:$0]  %s4, 2048, %s69, [#allocation8], 128, 128, 8
    $region21: #{dnn_forward_fused.1} parent=1 // pred_fallthru
      _
    // Predicated region
    $region22: #{dnn_forward_fused.1} parent=1 // pred_check
      _
    $region23: #{dnn_forward_fused.1} parent=1 // pred_check_branch
      %76 = sbr.rel (0) target = $region25
    $region24: #{dnn_forward_fused.1} parent=1 // pred_region
      _
    $region25: #{dnn_forward_fused.1} parent=1 // pred_fallthru
      _
    // Predicated region
    $region26: #{dnn_forward_fused.1} parent=1 // pred_check
      _
    $region27: #{dnn_forward_fused.1} parent=1 // pred_check_branch
      %78 = sbr.rel (0) target = $region29
    $region28: #{dnn_forward_fused.1} parent=1 // pred_region
      _
    $region29: #{dnn_forward_fused.1} parent=1 // pred_fallthru
      _
    // Predicated region
    $region30: #{dnn_forward_fused.1} parent=1 // pred_check
      _
    $region31: #{dnn_forward_fused.1} parent=1 // pred_check_branch
      %80 = sbr.rel (0) target = $region33
    $region32: #{dnn_forward_fused.1} parent=1 // pred_region
      _
    $region33: #{dnn_forward_fused.1} parent=1 // pred_fallthru
      _
    // Predicated region
    $region34: #{dnn_forward_fused.1} parent=1 // pred_check
      _
    $region35: #{dnn_forward_fused.1} parent=1 // pred_check_branch
      %82 = sbr.rel (0) target = $region37
    $region36: #{dnn_forward_fused.1} parent=1 // pred_region
      _
    $region37: #{dnn_forward_fused.1} parent=1 // pred_fallthru
      _
    // Predicated region
    $region38: #{dnn_forward_fused.1} parent=1 // pred_check
      _
    $region39: #{dnn_forward_fused.1} parent=1 // pred_check_branch
      %84 = sbr.rel (0) target = $region41
    $region40: #{dnn_forward_fused.1} parent=1 // pred_region
      %85 = dma.done [#allocation3], 128
    $region41: #{dnn_forward_fused.1} parent=1 // pred_fallthru
      _
    // Predicated region
    $region42: #{dnn_forward_fused.1} parent=1 // pred_check
      _
    $region43: #{dnn_forward_fused.1} parent=1 // pred_check_branch
      %87 = sbr.rel (0) target = $region45
    $region44: #{dnn_forward_fused.1} parent=1 // pred_region
      %88 = dma.done [#allocation5], 256
    $region45: #{dnn_forward_fused.1} parent=1 // pred_fallthru
      _
    // Predicated region
    $region46: #{dnn_forward_fused.1} parent=1 // pred_check
      _
    $region47: #{dnn_forward_fused.1} parent=1 // pred_check_branch
      %90 = sbr.rel (0) target = $region49
    $region48: #{dnn_forward_fused.1} parent=1 // pred_region
      %91 = dma.done [#allocation5], 2048
    $region49: #{dnn_forward_fused.1} parent=1 // pred_fallthru
      _
    // Predicated region
    $region50: #{dnn_forward_fused.1} parent=1 // pred_check
      _
    $region51: #{dnn_forward_fused.1} parent=1 // pred_check_branch
      %93 = sbr.rel (0) target = $region53
    $region52: #{dnn_forward_fused.1} parent=1 // pred_region
      %94 = dma.done [#allocation8], 2048
    $region53: #{dnn_forward_fused.1} parent=1 // pred_fallthru
      _
    // Predicated region
    $region54: #{dnn_forward_fused.1} parent=1 // pred_check
      _
    $region55: #{dnn_forward_fused.1} parent=1 // pred_check_branch
      %96 = sbr.rel (0) target = $region57
    $region56: #{dnn_forward_fused.1} parent=1 // pred_region
      %97 = dma.done [#allocation8], 2048
    $region57: #{dnn_forward_fused.1} parent=1 // pred_fallthru
      _
    %v98 = vld [vmem:[#allocation2] sm:$0xff]
    %v99 = vld [vmem:[#allocation4] sm:$0xff]
    %v100 = vld [vmem:[#allocation4 + $0x8] sm:$0xff]
    %v101 = vld [vmem:[%s5] sm:$0x1]
    %v103 = vlaneseq
    %v104 = vshrl.u32 %v103, 7
    %v105 = vsub.s32 0, %v104
    %v106 = vrot.slane %v101, %v105
    %vm108 = vcmask 130048
    %v110 = vsel %vm108, %v98, 0
    %112 = vmatprep.subr.mxu0 0.0
    %113 = vmatpush1.msra.mxu0 %v99
    %114 = vmatprep.subr.mxu0 0.0
    %115 = vmatpush1.msra.mxu0 %v100
    %116 = vmatprep.subr.mxu0 0.0
    %117 = vmatpush1.msra.mxu0 0.0
    %118 = vmatprep.subr.mxu0 0.0
    %119 = vmatpush1.msra.mxu0 0.0
    %120 = vmatprep.subr.mxu0 0.0
    %121 = vmatpush1.msra.mxu0 0.0
    %122 = vmatprep.subr.mxu0 0.0
    %123 = vmatpush1.msra.mxu0 0.0
    %124 = vmatprep.subr.mxu0 0.0
    %125 = vmatpush1.msra.mxu0 0.0
    %126 = vmatprep.subr.mxu0 0.0
    %127 = vmatpush1.msra.mxu0 0.0
    %128 = vmatprep.subr.mxu0 0.0
    %129 = vmatpush1.msra.mxu0 0.0
    %130 = vmatprep.subr.mxu0 0.0
    %131 = vmatpush1.msra.mxu0 0.0
    %132 = vmatprep.subr.mxu0 0.0
    %133 = vmatpush1.msra.mxu0 0.0
    %134 = vmatprep.subr.mxu0 0.0
    %135 = vmatpush1.msra.mxu0 0.0
    %136 = vmatprep.subr.mxu0 0.0
    %137 = vmatpush1.msra.mxu0 0.0
    %138 = vmatprep.subr.mxu0 0.0
    %139 = vmatpush1.msra.mxu0 0.0
    %140 = vmatprep.subr.mxu0 0.0
    %141 = vmatpush1.msra.mxu0 0.0
    %142 = vmatprep.subr.mxu0 0.0
    %143 = vmatpush1.msra.mxu0 0.0
    %144 = vmatprep.subr.mxu0 0.0
    %145 = vmatpush1.msra.mxu0 0.0
    %146 = vmatprep.subr.mxu0 0.0
    %147 = vmatpush1.msra.mxu0 0.0
    %148 = vmatprep.subr.mxu0 0.0
    %149 = vmatpush1.msra.mxu0 0.0
    %150 = vmatprep.subr.mxu0 0.0
    %151 = vmatpush1.msra.mxu0 0.0
    %152 = vmatprep.subr.mxu0 0.0
    %153 = vmatpush1.msra.mxu0 0.0
    %154 = vmatprep.subr.mxu0 0.0
    %155 = vmatpush1.msra.mxu0 0.0
    %156 = vmatprep.subr.mxu0 0.0
    %157 = vmatpush1.msra.mxu0 0.0
    %158 = vmatprep.subr.mxu0 0.0
    %159 = vmatpush1.msra.mxu0 0.0
    %160 = vmatprep.subr.mxu0 0.0
    %161 = vmatpush1.msra.mxu0 0.0
    %162 = vmatprep.subr.mxu0 0.0
    %163 = vmatpush1.msra.mxu0 0.0
    %164 = vmatprep.subr.mxu0 0.0
    %165 = vmatpush1.msra.mxu0 0.0
    %166 = vmatprep.subr.mxu0 0.0
    %167 = vmatpush1.msra.mxu0 0.0
    %168 = vmatprep.subr.mxu0 0.0
    %169 = vmatpush1.msra.mxu0 0.0
    %170 = vmatprep.subr.mxu0 0.0
    %171 = vmatpush1.msra.mxu0 0.0
    %172 = vmatprep.subr.mxu0 0.0
    %173 = vmatpush1.msra.mxu0 0.0
    %174 = vmatprep.subr.mxu0 0.0
    %175 = vmatpush1.msra.mxu0 0.0
    %176 = vmatprep.mubr.f32.mxu0 0.0
    %177 = vmatmul.mubr.f32.gmra.mrb[0].mxu0 %v110
    %v178 = vpop.f32.mrb[0].mxu0
    %v179 = vadd.f32 %v106, %v178
    %v180 = vpop.f32.mrb[0].mxu0
    %181 = vdwg.mxu0
    %v182 = vtanh.pop %v179
    %v183 = vld [vmem:[#allocation6] sm:$0xff]
    %v184 = vld [vmem:[#allocation6 + $0x8] sm:$0xff]
    %v185 = vld [vmem:[#allocation6 + $0x10] sm:$0xff]
    %v186 = vld [vmem:[#allocation6 + $0x18] sm:$0xff]
    %v187 = vld [vmem:[#allocation6 + $0x20] sm:$0xff]
    %v188 = vld [vmem:[#allocation6 + $0x28] sm:$0xff]
    %v189 = vld [vmem:[#allocation6 + $0x30] sm:$0xff]
    %v190 = vld [vmem:[#allocation6 + $0x38] sm:$0xff]
    %v191 = vld [vmem:[#allocation6 + $0x40] sm:$0xff]
    %v192 = vld [vmem:[#allocation6 + $0x48] sm:$0xff]
    %v193 = vld [vmem:[#allocation6 + $0x50] sm:$0xff]
    %v194 = vld [vmem:[#allocation6 + $0x58] sm:$0xff]
    %v195 = vld [vmem:[#allocation6 + $0x60] sm:$0xff]
    %v196 = vld [vmem:[#allocation6 + $0x68] sm:$0xff]
    %v197 = vld [vmem:[#allocation6 + $0x70] sm:$0xff]
    %v198 = vld [vmem:[#allocation6 + $0x78] sm:$0xff]
    %v199 = vld [vmem:[%s6] sm:$0x1]
    %v201 = vlaneseq
    %v202 = vshrl.u32 %v201, 7
    %v203 = vsub.s32 0, %v202
    %v204 = vrot.slane %v199, %v203
    %206 = vmatprep.subr.mxu0 0.0
    %207 = vmatpush1.msra.mxu0 %v183
    %208 = vmatprep.subr.mxu0 0.0
    %209 = vmatpush1.msra.mxu0 %v184
    %210 = vmatprep.subr.mxu0 0.0
    %211 = vmatpush1.msra.mxu0 %v185
    %212 = vmatprep.subr.mxu0 0.0
    %213 = vmatpush1.msra.mxu0 %v186
    %214 = vmatprep.subr.mxu0 0.0
    %215 = vmatpush1.msra.mxu0 %v187
    %216 = vmatprep.subr.mxu0 0.0
    %217 = vmatpush1.msra.mxu0 %v188
    %218 = vmatprep.subr.mxu0 0.0
    %219 = vmatpush1.msra.mxu0 %v189
    %220 = vmatprep.subr.mxu0 0.0
    %221 = vmatpush1.msra.mxu0 %v190
    %222 = vmatprep.subr.mxu0 0.0
    %223 = vmatpush1.msra.mxu0 %v191
    %224 = vmatprep.subr.mxu0 0.0
    %225 = vmatpush1.msra.mxu0 %v192
    %226 = vmatprep.subr.mxu0 0.0
    %227 = vmatpush1.msra.mxu0 %v193
    %228 = vmatprep.subr.mxu0 0.0
    %229 = vmatpush1.msra.mxu0 %v194
    %230 = vmatprep.subr.mxu0 0.0
    %231 = vmatpush1.msra.mxu0 %v195
    %232 = vmatprep.subr.mxu0 0.0
    %233 = vmatpush1.msra.mxu0 %v196
    %234 = vmatprep.subr.mxu0 0.0
    %235 = vmatpush1.msra.mxu0 %v197
    %236 = vmatprep.subr.mxu0 0.0
    %237 = vmatpush1.msra.mxu0 %v198
    %238 = vmatprep.subr.mxu0 0.0
    %239 = vmatpush1.msra.mxu0 0.0
    %240 = vmatprep.subr.mxu0 0.0
    %241 = vmatpush1.msra.mxu0 0.0
    %242 = vmatprep.subr.mxu0 0.0
    %243 = vmatpush1.msra.mxu0 0.0
    %244 = vmatprep.subr.mxu0 0.0
    %245 = vmatpush1.msra.mxu0 0.0
    %246 = vmatprep.subr.mxu0 0.0
    %247 = vmatpush1.msra.mxu0 0.0
    %248 = vmatprep.subr.mxu0 0.0
    %249 = vmatpush1.msra.mxu0 0.0
    %250 = vmatprep.subr.mxu0 0.0
    %251 = vmatpush1.msra.mxu0 0.0
    %252 = vmatprep.subr.mxu0 0.0
    %253 = vmatpush1.msra.mxu0 0.0
    %254 = vmatprep.subr.mxu0 0.0
    %255 = vmatpush1.msra.mxu0 0.0
    %256 = vmatprep.subr.mxu0 0.0
    %257 = vmatpush1.msra.mxu0 0.0
    %258 = vmatprep.subr.mxu0 0.0
    %259 = vmatpush1.msra.mxu0 0.0
    %260 = vmatprep.subr.mxu0 0.0
    %261 = vmatpush1.msra.mxu0 0.0
    %262 = vmatprep.subr.mxu0 0.0
    %263 = vmatpush1.msra.mxu0 0.0
    %264 = vmatprep.subr.mxu0 0.0
    %265 = vmatpush1.msra.mxu0 0.0
    %266 = vmatprep.subr.mxu0 0.0
    %267 = vmatpush1.msra.mxu0 0.0
    %268 = vmatprep.subr.mxu0 0.0
    %269 = vmatpush1.msra.mxu0 0.0
    %270 = vmatprep.mubr.f32.mxu0 0.0
    %271 = vmatmul.mubr.f32.gmra.mrb[0].mxu0 %v182
    %v272 = vpop.f32.mrb[0].mxu0
    %v273 = vadd.f32 %v204, %v272
    %v274 = vpop.f32.mrb[0].mxu0
    %275 = vdwg.mxu0
    %v276 = vtanh.pop %v273
    %v277 = vld [vmem:[#allocation7] sm:$0xff]
    %v278 = vld [vmem:[#allocation7 + $0x8] sm:$0xff]
    %v279 = vld [vmem:[#allocation7 + $0x10] sm:$0xff]
    %v280 = vld [vmem:[#allocation7 + $0x18] sm:$0xff]
    %v281 = vld [vmem:[#allocation7 + $0x20] sm:$0xff]
    %v282 = vld [vmem:[#allocation7 + $0x28] sm:$0xff]
    %v283 = vld [vmem:[#allocation7 + $0x30] sm:$0xff]
    %v284 = vld [vmem:[#allocation7 + $0x38] sm:$0xff]
    %v285 = vld [vmem:[#allocation7 + $0x40] sm:$0xff]
    %v286 = vld [vmem:[#allocation7 + $0x48] sm:$0xff]
    %v287 = vld [vmem:[#allocation7 + $0x50] sm:$0xff]
    %v288 = vld [vmem:[#allocation7 + $0x58] sm:$0xff]
    %v289 = vld [vmem:[#allocation7 + $0x60] sm:$0xff]
    %v290 = vld [vmem:[#allocation7 + $0x68] sm:$0xff]
    %v291 = vld [vmem:[#allocation7 + $0x70] sm:$0xff]
    %v292 = vld [vmem:[#allocation7 + $0x78] sm:$0xff]
    %v293 = vld [vmem:[%s7] sm:$0x1]
    %v295 = vlaneseq
    %v296 = vshrl.u32 %v295, 7
    %v297 = vsub.s32 0, %v296
    %v298 = vrot.slane %v293, %v297
    %300 = vmatprep.subr.mxu0 0.0
    %301 = vmatpush1.msra.mxu0 %v277
    %302 = vmatprep.subr.mxu0 0.0
    %303 = vmatpush1.msra.mxu0 %v278
    %304 = vmatprep.subr.mxu0 0.0
    %305 = vmatpush1.msra.mxu0 %v279
    %306 = vmatprep.subr.mxu0 0.0
    %307 = vmatpush1.msra.mxu0 %v280
    %308 = vmatprep.subr.mxu0 0.0
    %309 = vmatpush1.msra.mxu0 %v281
    %310 = vmatprep.subr.mxu0 0.0
    %311 = vmatpush1.msra.mxu0 %v282
    %312 = vmatprep.subr.mxu0 0.0
    %313 = vmatpush1.msra.mxu0 %v283
    %314 = vmatprep.subr.mxu0 0.0
    %315 = vmatpush1.msra.mxu0 %v284
    %316 = vmatprep.subr.mxu0 0.0
    %317 = vmatpush1.msra.mxu0 %v285
    %318 = vmatprep.subr.mxu0 0.0
    %319 = vmatpush1.msra.mxu0 %v286
    %320 = vmatprep.subr.mxu0 0.0
    %321 = vmatpush1.msra.mxu0 %v287
    %322 = vmatprep.subr.mxu0 0.0
    %323 = vmatpush1.msra.mxu0 %v288
    %324 = vmatprep.subr.mxu0 0.0
    %325 = vmatpush1.msra.mxu0 %v289
    %326 = vmatprep.subr.mxu0 0.0
    %327 = vmatpush1.msra.mxu0 %v290
    %328 = vmatprep.subr.mxu0 0.0
    %329 = vmatpush1.msra.mxu0 %v291
    %330 = vmatprep.subr.mxu0 0.0
    %331 = vmatpush1.msra.mxu0 %v292
    %332 = vmatprep.subr.mxu0 0.0
    %333 = vmatpush1.msra.mxu0 0.0
    %334 = vmatprep.subr.mxu0 0.0
    %335 = vmatpush1.msra.mxu0 0.0
    %336 = vmatprep.subr.mxu0 0.0
    %337 = vmatpush1.msra.mxu0 0.0
    %338 = vmatprep.subr.mxu0 0.0
    %339 = vmatpush1.msra.mxu0 0.0
    %340 = vmatprep.subr.mxu0 0.0
    %341 = vmatpush1.msra.mxu0 0.0
    %342 = vmatprep.subr.mxu0 0.0
    %343 = vmatpush1.msra.mxu0 0.0
    %344 = vmatprep.subr.mxu0 0.0
    %345 = vmatpush1.msra.mxu0 0.0
    %346 = vmatprep.subr.mxu0 0.0
    %347 = vmatpush1.msra.mxu0 0.0
    %348 = vmatprep.subr.mxu0 0.0
    %349 = vmatpush1.msra.mxu0 0.0
    %350 = vmatprep.subr.mxu0 0.0
    %351 = vmatpush1.msra.mxu0 0.0
    %352 = vmatprep.subr.mxu0 0.0
    %353 = vmatpush1.msra.mxu0 0.0
    %354 = vmatprep.subr.mxu0 0.0
    %355 = vmatpush1.msra.mxu0 0.0
    %356 = vmatprep.subr.mxu0 0.0
    %357 = vmatpush1.msra.mxu0 0.0
    %358 = vmatprep.subr.mxu0 0.0
    %359 = vmatpush1.msra.mxu0 0.0
    %360 = vmatprep.subr.mxu0 0.0
    %361 = vmatpush1.msra.mxu0 0.0
    %362 = vmatprep.subr.mxu0 0.0
    %363 = vmatpush1.msra.mxu0 0.0
    %364 = vmatprep.mubr.f32.mxu0 0.0
    %365 = vmatmul.mubr.f32.gmra.mrb[0].mxu0 %v276
    %v366 = vpop.f32.mrb[0].mxu0
    %v367 = vadd.f32 %v298, %v366
    %v368 = vpop.f32.mrb[0].mxu0
    %369 = vdwg.mxu0
    %v370 = vtanh.pop %v367
    %v371 = vld [vmem:[#allocation9] sm:$0xff]
    %v372 = vld [vmem:[#allocation9 + $0x8] sm:$0xff]
    %v373 = vld [vmem:[#allocation9 + $0x10] sm:$0xff]
    %v374 = vld [vmem:[#allocation9 + $0x18] sm:$0xff]
    %v375 = vld [vmem:[#allocation9 + $0x20] sm:$0xff]
    %v376 = vld [vmem:[#allocation9 + $0x28] sm:$0xff]
    %v377 = vld [vmem:[#allocation9 + $0x30] sm:$0xff]
    %v378 = vld [vmem:[#allocation9 + $0x38] sm:$0xff]
    %v379 = vld [vmem:[#allocation9 + $0x40] sm:$0xff]
    %v380 = vld [vmem:[#allocation9 + $0x48] sm:$0xff]
    %v381 = vld [vmem:[#allocation9 + $0x50] sm:$0xff]
    %v382 = vld [vmem:[#allocation9 + $0x58] sm:$0xff]
    %v383 = vld [vmem:[#allocation9 + $0x60] sm:$0xff]
    %v384 = vld [vmem:[#allocation9 + $0x68] sm:$0xff]
    %v385 = vld [vmem:[#allocation9 + $0x70] sm:$0xff]
    %v386 = vld [vmem:[#allocation9 + $0x78] sm:$0xff]
    %v387 = vld [vmem:[%s8] sm:$0x1]
    %v389 = vlaneseq
    %v390 = vshrl.u32 %v389, 7
    %v391 = vsub.s32 0, %v390
    %v392 = vrot.slane %v387, %v391
    %394 = vmatprep.subr.mxu0 0.0
    %395 = vmatpush1.msra.mxu0 %v371
    %396 = vmatprep.subr.mxu0 0.0
    %397 = vmatpush1.msra.mxu0 %v372
    %398 = vmatprep.subr.mxu0 0.0
    %399 = vmatpush1.msra.mxu0 %v373
    %400 = vmatprep.subr.mxu0 0.0
    %401 = vmatpush1.msra.mxu0 %v374
    %402 = vmatprep.subr.mxu0 0.0
    %403 = vmatpush1.msra.mxu0 %v375
    %404 = vmatprep.subr.mxu0 0.0
    %405 = vmatpush1.msra.mxu0 %v376
    %406 = vmatprep.subr.mxu0 0.0
    %407 = vmatpush1.msra.mxu0 %v377
    %408 = vmatprep.subr.mxu0 0.0
    %409 = vmatpush1.msra.mxu0 %v378
    %410 = vmatprep.subr.mxu0 0.0
    %411 = vmatpush1.msra.mxu0 %v379
    %412 = vmatprep.subr.mxu0 0.0
    %413 = vmatpush1.msra.mxu0 %v380
    %414 = vmatprep.subr.mxu0 0.0
    %415 = vmatpush1.msra.mxu0 %v381
    %416 = vmatprep.subr.mxu0 0.0
    %417 = vmatpush1.msra.mxu0 %v382
    %418 = vmatprep.subr.mxu0 0.0
    %419 = vmatpush1.msra.mxu0 %v383
    %420 = vmatprep.subr.mxu0 0.0
    %421 = vmatpush1.msra.mxu0 %v384
    %422 = vmatprep.subr.mxu0 0.0
    %423 = vmatpush1.msra.mxu0 %v385
    %424 = vmatprep.subr.mxu0 0.0
    %425 = vmatpush1.msra.mxu0 %v386
    %426 = vmatprep.subr.mxu0 0.0
    %427 = vmatpush1.msra.mxu0 0.0
    %428 = vmatprep.subr.mxu0 0.0
    %429 = vmatpush1.msra.mxu0 0.0
    %430 = vmatprep.subr.mxu0 0.0
    %431 = vmatpush1.msra.mxu0 0.0
    %432 = vmatprep.subr.mxu0 0.0
    %433 = vmatpush1.msra.mxu0 0.0
    %434 = vmatprep.subr.mxu0 0.0
    %435 = vmatpush1.msra.mxu0 0.0
    %436 = vmatprep.subr.mxu0 0.0
    %437 = vmatpush1.msra.mxu0 0.0
    %438 = vmatprep.subr.mxu0 0.0
    %439 = vmatpush1.msra.mxu0 0.0
    %440 = vmatprep.subr.mxu0 0.0
    %441 = vmatpush1.msra.mxu0 0.0
    %442 = vmatprep.subr.mxu0 0.0
    %443 = vmatpush1.msra.mxu0 0.0
    %444 = vmatprep.subr.mxu0 0.0
    %445 = vmatpush1.msra.mxu0 0.0
    %446 = vmatprep.subr.mxu0 0.0
    %447 = vmatpush1.msra.mxu0 0.0
    %448 = vmatprep.subr.mxu0 0.0
    %449 = vmatpush1.msra.mxu0 0.0
    %450 = vmatprep.subr.mxu0 0.0
    %451 = vmatpush1.msra.mxu0 0.0
    %452 = vmatprep.subr.mxu0 0.0
    %453 = vmatpush1.msra.mxu0 0.0
    %454 = vmatprep.subr.mxu0 0.0
    %455 = vmatpush1.msra.mxu0 0.0
    %456 = vmatprep.subr.mxu0 0.0
    %457 = vmatpush1.msra.mxu0 0.0
    %458 = vmatprep.mubr.f32.mxu0 0.0
    %459 = vmatmul.mubr.f32.gmra.mrb[0].mxu0 %v370
    %v460 = vpop.f32.mrb[0].mxu0
    %v461 = vadd.f32 %v392, %v460
    %v462 = vpop.f32.mrb[0].mxu0
    %463 = vdwg.mxu0
    %464 = vst [vmem:[%s9] sm:$0xff] %v461
    // Predicated region
    $region58: #{dnn_forward_fused.1} parent=1 // pred_check
      _
    $region59: #{dnn_forward_fused.1} parent=1 // pred_check_branch
      %466 = sbr.rel (0) target = $region61
    $region60: #{dnn_forward_fused.1} parent=1 // pred_region
      _
    $region61: #{dnn_forward_fused.1} parent=1 // pred_fallthru
      _
    // Predicated region
    $region62: #{dnn_forward_fused.1} parent=1 // pred_check
      _
    $region63: #{dnn_forward_fused.1} parent=1 // pred_check_branch
      %468 = sbr.rel (0) target = $region65
    $region64: #{dnn_forward_fused.1} parent=1 // pred_region
      _
    $region65: #{dnn_forward_fused.1} parent=1 // pred_fallthru
      _
    %469 = vsyncpa [#allocation3], 1
    %470 = vsyncpa [#allocation5], 1
    %471 = vsyncpa [#allocation8], 1

</llo_original>
